<compile_context>
chip_gen: v7x
topology: tpu7x:2x2x1
jax: 0.10.0
libtpu: 0.0.40
codegen_flags: <defaults>
</compile_context>

<pallas_src>
import functools
from typing import NamedTuple

import jax
import jax.numpy as jnp
from jax.experimental import pallas as pl
from jax.experimental.pallas import tpu as pltpu

LANES = 128   # TPU lane width; hidden/action features are lane-padded for the MXU.
ALIGN = 16    # weight-slab row alignment (safe for bf16 sublane packing).


def _round_up(a: int, b: int) -> int:
    return (a + b - 1) // b * b


class SlabLayout(NamedTuple):
    state_size: int
    hidden: int
    action_space: int
    s_rows: int    # padded state width / w1 rows (multiple of 16)
    h_pad: int     # padded hidden width (128)
    r_w1: int
    r_w2: int
    r_w3: int
    w_rows: int    # total weight-slab rows
    r_b1: int
    r_b2: int
    r_b3: int
    b_rows: int    # total bias-slab rows


def make_layout(state_size: int, hidden: int, action_space: int) -> SlabLayout:
    assert hidden <= LANES and action_space <= LANES, "layout assumes <=128 features"
    s_rows = _round_up(state_size, ALIGN)
    h_pad = _round_up(hidden, LANES)                  # 128
    r_w1 = 0
    r_w2 = r_w1 + s_rows                              # 16-aligned
    r_w3 = r_w2 + h_pad                               # 16-aligned
    w_rows = r_w3 + h_pad
    r_b1, r_b2, r_b3 = 0, 8, 16                       # f32 bias rows, 8-aligned
    b_rows = 24
    return SlabLayout(state_size, hidden, action_space, s_rows, h_pad,
                      r_w1, r_w2, r_w3, w_rows, r_b1, r_b2, r_b3, b_rows)


def pack_params(params, layout: SlabLayout, dtype=jnp.bfloat16):
    """Pack weights into one lane-padded slab (dtype = bf16 or f32) and biases
    into a small f32 slab.  Zero padding is exact through ReLU."""
    lo = layout
    s, h, a = lo.state_size, lo.hidden, lo.action_space
    w = jnp.zeros((lo.w_rows, LANES), jnp.float32)
    w = w.at[lo.r_w1:lo.r_w1 + s, :h].set(params["w1"])
    w = w.at[lo.r_w2:lo.r_w2 + h, :h].set(params["w2"])
    w = w.at[lo.r_w3:lo.r_w3 + h, :a].set(params["w3"])
    b = jnp.zeros((lo.b_rows, LANES), jnp.float32)
    b = b.at[lo.r_b1, :h].set(params["b1"].reshape(-1))
    b = b.at[lo.r_b2, :h].set(params["b2"].reshape(-1))
    b = b.at[lo.r_b3, :a].set(params["b3"].reshape(-1))
    return w.astype(dtype), b


def _qnetwork_kernel(x_ref, w_ref, b_ref, o_ref, *, layout: SlabLayout):
    lo = layout
    cdt = w_ref.dtype                                   # bf16 (fast) or f32 (validation)

    x = x_ref[...].astype(cdt)                          # (TB, s_rows)

    # Static, 16-row-aligned, 16-row-multiple slices of the weight slab.
    w1 = w_ref[lo.r_w1:lo.r_w1 + lo.s_rows, :]          # (s_rows, 128)
    w2 = w_ref[lo.r_w2:lo.r_w2 + lo.h_pad, :]           # (128, 128)
    w3 = w_ref[lo.r_w3:lo.r_w3 + lo.h_pad, :]           # (128, 128)
    # f32 bias rows.
    b1 = b_ref[lo.r_b1:lo.r_b1 + 1, :]                  # (1, 128)
    b2 = b_ref[lo.r_b2:lo.r_b2 + 1, :]
    b3 = b_ref[lo.r_b3:lo.r_b3 + 1, :]

    # Lane-dense MXU matmuls (bf16 inputs, f32 accumulation); bias/ReLU in f32.
    h = jnp.maximum(jnp.dot(x, w1, preferred_element_type=jnp.float32) + b1, 0.0)
    h = jnp.maximum(jnp.dot(h.astype(cdt), w2,
                            preferred_element_type=jnp.float32) + b2, 0.0)
    q = jnp.dot(h.astype(cdt), w3, preferred_element_type=jnp.float32) + b3

    # Narrow store: only the real action columns leave the kernel (masked vst,
    # but ~32x fewer HBM output bytes than a 128-lane store).
    o_ref[...] = q[:, :lo.action_space].astype(o_ref.dtype)


def _choose_tiling(batch: int, block_b: int, want_tiles: int):
    """Pick (tile_rows, padded_batch, n_tiles) with minimal padding and, when the
    batch is big enough, at least `want_tiles` grid steps (v7x dual-TC)."""
    max_tiles = max(1, batch // 8)
    n_tiles = max(pl.cdiv(batch, block_b), min(want_tiles, max_tiles))
    tb = _round_up(pl.cdiv(batch, n_tiles), 8)
    n_tiles = pl.cdiv(batch, tb)
    return tb, n_tiles * tb, n_tiles


def qnetwork_forward(x, w_slab, b_slab, layout: SlabLayout, *,
                     block_b: int = 1024, want_tiles: int = 2):
    """x: (B, state_size) f32.  w_slab/b_slab from pack_params."""
    lo = layout
    B = x.shape[0]
    TB, B_pad, n_tiles = _choose_tiling(B, block_b, want_tiles)

    x = x.astype(jnp.float32)
    if B_pad == B and x.shape[1] == lo.s_rows:
        x_p = x                                   # pass straight through, no pad op
    else:
        x_p = jnp.zeros((B_pad, lo.s_rows), jnp.float32).at[:B, :lo.state_size].set(x)

    flops = 2 * B_pad * (lo.s_rows * lo.h_pad + 2 * lo.h_pad * lo.h_pad)
    bytes_accessed = (x_p.size * x_p.dtype.itemsize
                      + w_slab.size * w_slab.dtype.itemsize
                      + b_slab.size * b_slab.dtype.itemsize
                      + B_pad * lo.action_space * 4)

    out = pl.pallas_call(
        functools.partial(_qnetwork_kernel, layout=lo),
        out_shape=jax.ShapeDtypeStruct((B_pad, lo.action_space), jnp.float32),
        grid=(n_tiles,),
        in_specs=[
            pl.BlockSpec((TB, lo.s_rows), lambda i: (i, 0)),        # batch tile of x
            pl.BlockSpec((lo.w_rows, LANES), lambda i: (0, 0)),     # resident weights
            pl.BlockSpec((lo.b_rows, LANES), lambda i: (0, 0)),     # resident biases
        ],
        out_specs=pl.BlockSpec((TB, lo.action_space), lambda i: (i, 0)),
        compiler_params=pltpu.CompilerParams(
            dimension_semantics=("parallel",),        # v7x: batch tiles across both TCs
        ),
        cost_estimate=pl.CostEstimate(flops=flops, transcendentals=0,
                                      bytes_accessed=bytes_accessed),
    )(x_p, w_slab, b_slab)

    return out if B_pad == B else out[:B]


def init_params(key, state_size, action_space, hidden=64):
    """Deterministic synthetic init (uniform, like PyTorch nn.Linear defaults)."""
    ks = jax.random.split(key, 6)

    def lin(kw, kb, fan_in, fan_out):
        bound = 1.0 / jnp.sqrt(fan_in)
        w = jax.random.uniform(kw, (fan_in, fan_out), jnp.float32, -bound, bound)
        b = jax.random.uniform(kb, (1, fan_out), jnp.float32, -bound, bound)
        return w, b

    w1, b1 = lin(ks[0], ks[1], state_size, hidden)
    w2, b2 = lin(ks[2], ks[3], hidden, hidden)
    w3, b3 = lin(ks[4], ks[5], hidden, action_space)
    return {"w1": w1, "b1": b1, "w2": w2, "b2": b2, "w3": w3, "b3": b3}


def qnetwork_reference(x, p):
    h = jnp.maximum(x @ p["w1"] + p["b1"], 0.0)
    h = jnp.maximum(h @ p["w2"] + p["b2"], 0.0)
    return h @ p["w3"] + p["b3"]


if __name__ == "__main__":
    state_size = 8      # LunarLander-v2 observation dim
    action_space = 4    # LunarLander-v2 action dim
    hidden = 64

    key = jax.random.PRNGKey(0)
    k_params, k_x1, k_x2 = jax.random.split(key, 3)

    params = init_params(k_params, state_size, action_space, hidden)
    layout = make_layout(state_size, hidden, action_space)

    w_f32, b_f32 = pack_params(params, layout, dtype=jnp.float32)     # validation path
    w_bf16, b_bf16 = pack_params(params, layout, dtype=jnp.bfloat16)  # fast path

    x_small = jax.random.normal(k_x1, (8, state_size), dtype=jnp.float32)
    x_big = jax.random.normal(k_x2, (300, state_size), dtype=jnp.float32)

    ref_small = qnetwork_reference(x_small, params)
    ref_big = qnetwork_reference(x_big, params)

    # 1) f32 path: bit-tight agreement with the reference (single grid step).
    out32 = jax.block_until_ready(qnetwork_forward(x_small, w_f32, b_f32, layout))
    assert out32.shape == (8, action_space)
    assert jnp.allclose(out32, ref_small, atol=1e-5, rtol=1e-5), (
        f"f32 max abs err {jnp.max(jnp.abs(out32 - ref_small))}")

    # 2) bf16 weights / f32 accumulation: loose tolerance (expected ~1e-3 error).
    outbf = jax.block_until_ready(qnetwork_forward(x_small, w_bf16, b_bf16, layout))
    assert jnp.allclose(outbf, ref_small, atol=5e-2, rtol=5e-2), (
        f"bf16 max abs err {jnp.max(jnp.abs(outbf - ref_small))}")

    # 3) Larger batch: exercises multi-tile grid + small batch padding (300 -> 304).
    outbig = jax.block_until_ready(qnetwork_forward(x_big, w_bf16, b_bf16, layout))
    assert outbig.shape == (300, action_space)
    assert jnp.allclose(outbig, ref_big, atol=5e-2, rtol=5e-2), (
        f"bf16 (big batch) max abs err {jnp.max(jnp.abs(outbig - ref_big))}")

    print("KERNEL_OK")
</pallas_src>

<mosaic_0001>
module attributes {stable_mosaic.version = 11 : i64} {
  func.func @_qnetwork_kernel(%arg0: i32, %arg1: memref<8x16xf32, #tpu.memory_space<vmem>>, %arg2: memref<272x128xf32, #tpu.memory_space<vmem>>, %arg3: memref<24x128xf32, #tpu.memory_space<vmem>>, %arg4: memref<8x4xf32, #tpu.memory_space<vmem>>) attributes {dimension_semantics = [#tpu.dimension_semantics<parallel>], iteration_bounds = array<i64: 1>, scalar_prefetch = 0 : i64, scratch_operands = 0 : i64, tpu.core_type = #tpu.core_type<tc>, window_params = [{transform_indices = @transform_0, window_bounds = array<i64: 8, 16>}, {pipeline_mode = #tpu.pipeline_mode<synchronous>, transform_indices = @transform_1, window_bounds = array<i64: 272, 128>}, {pipeline_mode = #tpu.pipeline_mode<synchronous>, transform_indices = @transform_2, window_bounds = array<i64: 24, 128>}, {transform_indices = @transform_3, window_bounds = array<i64: 8, 4>}]} {
    %c0 = arith.constant 0 : index
    %c0_0 = arith.constant 0 : index
    %0 = vector.load %arg1[%c0, %c0_0] : memref<8x16xf32, #tpu.memory_space<vmem>>, vector<8x16xf32>
    %c0_1 = arith.constant 0 : index
    %c0_2 = arith.constant 0 : index
    %1 = vector.load %arg2[%c0_1, %c0_2] : memref<272x128xf32, #tpu.memory_space<vmem>>, vector<16x128xf32>
    %c16 = arith.constant 16 : index
    %c0_3 = arith.constant 0 : index
    %2 = vector.load %arg2[%c16, %c0_3] : memref<272x128xf32, #tpu.memory_space<vmem>>, vector<128x128xf32>
    %c144 = arith.constant 144 : index
    %c0_4 = arith.constant 0 : index
    %3 = vector.load %arg2[%c144, %c0_4] : memref<272x128xf32, #tpu.memory_space<vmem>>, vector<128x128xf32>
    %c0_5 = arith.constant 0 : index
    %c0_6 = arith.constant 0 : index
    %4 = vector.load %arg3[%c0_5, %c0_6] : memref<24x128xf32, #tpu.memory_space<vmem>>, vector<1x128xf32>
    %c8 = arith.constant 8 : index
    %c0_7 = arith.constant 0 : index
    %5 = vector.load %arg3[%c8, %c0_7] : memref<24x128xf32, #tpu.memory_space<vmem>>, vector<1x128xf32>
    %c16_8 = arith.constant 16 : index
    %c0_9 = arith.constant 0 : index
    %6 = vector.load %arg3[%c16_8, %c0_9] : memref<24x128xf32, #tpu.memory_space<vmem>>, vector<1x128xf32>
    %cst = arith.constant dense<0.000000e+00> : vector<8x128xf32>
    %7 = tpu.matmul %0, %1, %cst {dimension_numbers = #tpu.dot_dimension_numbers<[1], [0], [0], [1], [0, 0, 1, 1], [], []>} : vector<8x16xf32>, vector<16x128xf32>, vector<8x128xf32> -> vector<8x128xf32>
    %8 = vector.broadcast %4 : vector<1x128xf32> to vector<8x128xf32>
    %9 = arith.addf %7, %8 : vector<8x128xf32>
    %cst_10 = arith.constant 0.000000e+00 : f32
    %10 = vector.broadcast %cst_10 : f32 to vector<8x128xf32>
    %11 = arith.maximumf %9, %10 : vector<8x128xf32>
    %cst_11 = arith.constant dense<0.000000e+00> : vector<8x128xf32>
    %12 = tpu.matmul %11, %2, %cst_11 {dimension_numbers = #tpu.dot_dimension_numbers<[1], [0], [0], [1], [0, 0, 1, 1], [], []>} : vector<8x128xf32>, vector<128x128xf32>, vector<8x128xf32> -> vector<8x128xf32>
    %13 = vector.broadcast %5 : vector<1x128xf32> to vector<8x128xf32>
    %14 = arith.addf %12, %13 : vector<8x128xf32>
    %cst_12 = arith.constant 0.000000e+00 : f32
    %15 = vector.broadcast %cst_12 : f32 to vector<8x128xf32>
    %16 = arith.maximumf %14, %15 : vector<8x128xf32>
    %cst_13 = arith.constant dense<0.000000e+00> : vector<8x128xf32>
    %17 = tpu.matmul %16, %3, %cst_13 {dimension_numbers = #tpu.dot_dimension_numbers<[1], [0], [0], [1], [0, 0, 1, 1], [], []>} : vector<8x128xf32>, vector<128x128xf32>, vector<8x128xf32> -> vector<8x128xf32>
    %18 = vector.broadcast %6 : vector<1x128xf32> to vector<8x128xf32>
    %19 = arith.addf %17, %18 : vector<8x128xf32>
    %20 = vector.extract_strided_slice %19 {offsets = [0, 0], sizes = [8, 4], strides = [1, 1]} : vector<8x128xf32> to vector<8x4xf32>
    %c0_14 = arith.constant 0 : index
    %c0_15 = arith.constant 0 : index
    %21 = vector.load %arg4[%c0_14, %c0_15] : memref<8x4xf32, #tpu.memory_space<vmem>>, vector<8x4xf32>
    tpu.vector_store %arg4[%c0_14, %c0_15], %20 {strides = array<i32>} : memref<8x4xf32, #tpu.memory_space<vmem>>, vector<8x4xf32>,
    return
  }
  func.func @transform_0(%arg0: i32) -> (i32, i32) {
    %c0_i32 = arith.constant 0 : i32
    %c0_i32_0 = arith.constant 0 : i32
    return %arg0, %c0_i32 : i32, i32
  }
  func.func @transform_1(%arg0: i32) -> (i32, i32) {
    %c0_i32 = arith.constant 0 : i32
    %c0_i32_0 = arith.constant 0 : i32
    %c0_i32_1 = arith.constant 0 : i32
    return %c0_i32, %c0_i32_0 : i32, i32
  }
  func.func @transform_2(%arg0: i32) -> (i32, i32) {
    %c0_i32 = arith.constant 0 : i32
    %c0_i32_0 = arith.constant 0 : i32
    %c0_i32_1 = arith.constant 0 : i32
    return %c0_i32, %c0_i32_0 : i32, i32
  }
  func.func @transform_3(%arg0: i32) -> (i32, i32) {
    %c0_i32 = arith.constant 0 : i32
    %c0_i32_0 = arith.constant 0 : i32
    return %arg0, %c0_i32 : i32, i32
  }
}

</mosaic_0001>

<llo_original>
// kernel: tpu_custom_call.1
$region0: #{tpu_custom_call.1}
  #allocation0 [shape = 'u32[]', space=smem, size = 0x4, offset = 0x4, fixed_abs, tag = 'smem constant byte address 0x4 - core index']
  #allocation1 [shape = 'u32[144,128]{1,0:T(1,128)}', space=vmem, size = 0x12000, scoped, tag = 'internal scratch']
  %s0 = inlined_call_operand.hbm [shape: f32[8,16], index: 0, kind: input, shape index: {}]
  %s1 = inlined_call_operand.hbm [shape: f32[272,128], index: 1, kind: input, shape index: {}]
  %s2 = inlined_call_operand.hbm [shape: f32[24,128], index: 2, kind: input, shape index: {}]
  %s3 = inlined_call_operand.vmem [shape: f32[8,4], index: 3, kind: output, shape index: {}]
  %s4 = sld [smem:[#allocation0]]
  $region34: #{tpu_custom_call.1} parent=0
    _
  %s6 = ssub.s32 1, %s4
  %s7 = scalar_select 0, %s6, %s4
  $region1: #{tpu_custom_call.1} parent=0
    #allocation2 [shape = 'u8[4096]{0}', space=vmem, size = 0x1000, scoped, tag = 'input window, operand 0, single buffered']
    #allocation3 [shape = 's32[1]{0}', space=sflag, size = 0x4, scoped, tag = 'scoped memory for tpu_custom_call.1']
    #allocation4 [shape = 'u8[139264]{0}', space=vmem, size = 0x22000, scoped, tag = 'input window, operand 1, single buffered']
    #allocation5 [shape = 's32[1]{0}', space=sflag, size = 0x4, scoped, tag = 'scoped memory for tpu_custom_call.1']
    #allocation6 [shape = 'u8[12288]{0}', space=vmem, size = 0x3000, scoped, tag = 'input window, operand 2, single buffered']
    %8 = vsyncpa [#allocation3], 0
    %9 = vsyncpa [#allocation5], 0
    // Predicated region
    $region2: #{tpu_custom_call.1} parent=1 // pred_check
      _
    $region3: #{tpu_custom_call.1} parent=1 // pred_check_branch
      %11 = sbr.rel (0) target = $region5
    $region4: #{tpu_custom_call.1} parent=1 // pred_region
      %s13 = ssub.s32 128, 128
      %14 = vsyncadd [#allocation3], %s13
      %s16 = sshll.u32 [#allocation2], 4
      %s17 = int_to_ptr.vmem [resolvable:$true] %s16
      %19 = dma.hbm_to_vmem [thread:$0]  %s0, 128, %s17, [#allocation3]
    $region5: #{tpu_custom_call.1} parent=1 // pred_fallthru
      _
    // Predicated region
    $region6: #{tpu_custom_call.1} parent=1 // pred_check
      _
    $region7: #{tpu_custom_call.1} parent=1 // pred_check_branch
      %21 = sbr.rel (0) target = $region9
    $region8: #{tpu_custom_call.1} parent=1 // pred_region
      %s23 = ssub.s32 4352, 4352
      %24 = vsyncadd [#allocation5], %s23
      %s25 = sshll.u32 [#allocation4], 4
      %s26 = int_to_ptr.vmem [resolvable:$true] %s25
      %31 = dma.hbm_to_vmem [thread:$0]  %s1, 4352, %s26, [#allocation5], 128, 128, 8
    $region9: #{tpu_custom_call.1} parent=1 // pred_fallthru
      _
    // Predicated region
    $region10: #{tpu_custom_call.1} parent=1 // pred_check
      _
    $region11: #{tpu_custom_call.1} parent=1 // pred_check_branch
      %33 = sbr.rel (0) target = $region13
    $region12: #{tpu_custom_call.1} parent=1 // pred_region
      %s35 = ssub.s32 384, 384
      %36 = vsyncadd [#allocation5], %s35
      %s37 = sshll.u32 [#allocation6], 4
      %s38 = int_to_ptr.vmem [resolvable:$true] %s37
      %43 = dma.hbm_to_vmem [thread:$0]  %s2, 384, %s38, [#allocation5], 128, 128, 8
    $region13: #{tpu_custom_call.1} parent=1 // pred_fallthru
      _
    // Predicated region
    $region14: #{tpu_custom_call.1} parent=1 // pred_check
      _
    $region15: #{tpu_custom_call.1} parent=1 // pred_check_branch
      %45 = sbr.rel (0) target = $region17
    $region16: #{tpu_custom_call.1} parent=1 // pred_region
      %46 = dma.done [#allocation3], 128
    $region17: #{tpu_custom_call.1} parent=1 // pred_fallthru
      _
    // Predicated region
    $region18: #{tpu_custom_call.1} parent=1 // pred_check
      _
    $region19: #{tpu_custom_call.1} parent=1 // pred_check_branch
      %48 = sbr.rel (0) target = $region21
    $region20: #{tpu_custom_call.1} parent=1 // pred_region
      %49 = dma.done [#allocation5], 4352
    $region21: #{tpu_custom_call.1} parent=1 // pred_fallthru
      _
    // Predicated region
    $region22: #{tpu_custom_call.1} parent=1 // pred_check
      _
    $region23: #{tpu_custom_call.1} parent=1 // pred_check_branch
      %51 = sbr.rel (0) target = $region25
    $region24: #{tpu_custom_call.1} parent=1 // pred_region
      %52 = dma.done [#allocation5], 384
    $region25: #{tpu_custom_call.1} parent=1 // pred_fallthru
      _
    %v53 = vld [vmem:[#allocation2] sm:$0xff]
    %v54 = vld [vmem:[#allocation4] sm:$0xff]
    %v55 = vld [vmem:[#allocation4 + $0x8] sm:$0xff]
    %v56 = vld [vmem:[#allocation4 + $0x10] sm:$0xff]
    %v57 = vld [vmem:[#allocation4 + $0x18] sm:$0xff]
    %v58 = vld [vmem:[#allocation4 + $0x20] sm:$0xff]
    %v59 = vld [vmem:[#allocation4 + $0x28] sm:$0xff]
    %v60 = vld [vmem:[#allocation4 + $0x30] sm:$0xff]
    %v61 = vld [vmem:[#allocation4 + $0x38] sm:$0xff]
    %v62 = vld [vmem:[#allocation4 + $0x40] sm:$0xff]
    %v63 = vld [vmem:[#allocation4 + $0x48] sm:$0xff]
    %v64 = vld [vmem:[#allocation4 + $0x50] sm:$0xff]
    %v65 = vld [vmem:[#allocation4 + $0x58] sm:$0xff]
    %v66 = vld [vmem:[#allocation4 + $0x60] sm:$0xff]
    %v67 = vld [vmem:[#allocation4 + $0x68] sm:$0xff]
    %v68 = vld [vmem:[#allocation4 + $0x70] sm:$0xff]
    %v69 = vld [vmem:[#allocation4 + $0x78] sm:$0xff]
    %v70 = vld [vmem:[#allocation4 + $0x80] sm:$0xff]
    %v71 = vld [vmem:[#allocation4 + $0x88] sm:$0xff]
    %v72 = vld [vmem:[#allocation4 + $0x90] sm:$0xff]
    %v73 = vld [vmem:[#allocation4 + $0x98] sm:$0xff]
    %v74 = vld [vmem:[#allocation4 + $0xa0] sm:$0xff]
    %v75 = vld [vmem:[#allocation4 + $0xa8] sm:$0xff]
    %v76 = vld [vmem:[#allocation4 + $0xb0] sm:$0xff]
    %v77 = vld [vmem:[#allocation4 + $0xb8] sm:$0xff]
    %v78 = vld [vmem:[#allocation4 + $0xc0] sm:$0xff]
    %v79 = vld [vmem:[#allocation4 + $0xc8] sm:$0xff]
    %v80 = vld [vmem:[#allocation4 + $0xd0] sm:$0xff]
    %v81 = vld [vmem:[#allocation4 + $0xd8] sm:$0xff]
    %v82 = vld [vmem:[#allocation4 + $0xe0] sm:$0xff]
    %v83 = vld [vmem:[#allocation4 + $0xe8] sm:$0xff]
    %v84 = vld [vmem:[#allocation4 + $0xf0] sm:$0xff]
    %v85 = vld [vmem:[#allocation4 + $0xf8] sm:$0xff]
    %v86 = vld [vmem:[#allocation4 + $0x100] sm:$0xff]
    %v87 = vld [vmem:[#allocation4 + $0x108] sm:$0xff]
    %v88 = vld [vmem:[#allocation6] sm:$0x1]
    %v89 = vld [vmem:[#allocation6 + $0x8] sm:$0x1]
    %v90 = vld [vmem:[#allocation6 + $0x10] sm:$0x1]
    %v91 = vlaneseq
    %v92 = vshrl.u32 %v91, 7
    %v93 = vsub.s32 0, %v92
    %v94 = vrot.slane %v88, %v93
    %vm95 = vcmask 130048
    %v97 = vsel %vm95, %v53, 0
    %99 = vmatprep.subr.mxu0 0.0
    %100 = vmatpush1.msra.mxu0 %v54
    %101 = vmatprep.subr.mxu0 0.0
    %102 = vmatpush1.msra.mxu0 %v55
    %103 = vmatprep.subr.mxu0 0.0
    %104 = vmatpush1.msra.mxu0 0.0
    %105 = vmatprep.subr.mxu0 0.0
    %106 = vmatpush1.msra.mxu0 0.0
    %107 = vmatprep.subr.mxu0 0.0
    %108 = vmatpush1.msra.mxu0 0.0
    %109 = vmatprep.subr.mxu0 0.0
    %110 = vmatpush1.msra.mxu0 0.0
    %111 = vmatprep.subr.mxu0 0.0
    %112 = vmatpush1.msra.mxu0 0.0
    %113 = vmatprep.subr.mxu0 0.0
    %114 = vmatpush1.msra.mxu0 0.0
    %115 = vmatprep.subr.mxu0 0.0
    %116 = vmatpush1.msra.mxu0 0.0
    %117 = vmatprep.subr.mxu0 0.0
    %118 = vmatpush1.msra.mxu0 0.0
    %119 = vmatprep.subr.mxu0 0.0
    %120 = vmatpush1.msra.mxu0 0.0
    %121 = vmatprep.subr.mxu0 0.0
    %122 = vmatpush1.msra.mxu0 0.0
    %123 = vmatprep.subr.mxu0 0.0
    %124 = vmatpush1.msra.mxu0 0.0
    %125 = vmatprep.subr.mxu0 0.0
    %126 = vmatpush1.msra.mxu0 0.0
    %127 = vmatprep.subr.mxu0 0.0
    %128 = vmatpush1.msra.mxu0 0.0
    %129 = vmatprep.subr.mxu0 0.0
    %130 = vmatpush1.msra.mxu0 0.0
    %131 = vmatprep.subr.mxu0 0.0
    %132 = vmatpush1.msra.mxu0 0.0
    %133 = vmatprep.subr.mxu0 0.0
    %134 = vmatpush1.msra.mxu0 0.0
    %135 = vmatprep.subr.mxu0 0.0
    %136 = vmatpush1.msra.mxu0 0.0
    %137 = vmatprep.subr.mxu0 0.0
    %138 = vmatpush1.msra.mxu0 0.0
    %139 = vmatprep.subr.mxu0 0.0
    %140 = vmatpush1.msra.mxu0 0.0
    %141 = vmatprep.subr.mxu0 0.0
    %142 = vmatpush1.msra.mxu0 0.0
    %143 = vmatprep.subr.mxu0 0.0
    %144 = vmatpush1.msra.mxu0 0.0
    %145 = vmatprep.subr.mxu0 0.0
    %146 = vmatpush1.msra.mxu0 0.0
    %147 = vmatprep.subr.mxu0 0.0
    %148 = vmatpush1.msra.mxu0 0.0
    %149 = vmatprep.subr.mxu0 0.0
    %150 = vmatpush1.msra.mxu0 0.0
    %151 = vmatprep.subr.mxu0 0.0
    %152 = vmatpush1.msra.mxu0 0.0
    %153 = vmatprep.subr.mxu0 0.0
    %154 = vmatpush1.msra.mxu0 0.0
    %155 = vmatprep.subr.mxu0 0.0
    %156 = vmatpush1.msra.mxu0 0.0
    %157 = vmatprep.subr.mxu0 0.0
    %158 = vmatpush1.msra.mxu0 0.0
    %159 = vmatprep.subr.mxu0 0.0
    %160 = vmatpush1.msra.mxu0 0.0
    %161 = vmatprep.subr.mxu0 0.0
    %162 = vmatpush1.msra.mxu0 0.0
    %163 = vmatprep.mubr.f32.mxu0 0.0
    %164 = vmatmul.mubr.f32.gmra.mrb[0].mxu0 %v97
    %v165 = vpop.f32.mrb[0].mxu0
    %v166 = vadd.f32 %v94, %v165
    %v167 = vpop.f32.mrb[0].mxu0
    %168 = vdwg.mxu0
    %v169 = vmax.f32 %v166, 0.0
    %v170 = vlaneseq
    %v171 = vshrl.u32 %v170, 7
    %v172 = vsub.s32 0, %v171
    %v173 = vrot.slane %v89, %v172
    %174 = vmatprep.subr.mxu0 0.0
    %175 = vmatpush1.msra.mxu0 %v56
    %176 = vmatprep.subr.mxu0 0.0
    %177 = vmatpush1.msra.mxu0 %v57
    %178 = vmatprep.subr.mxu0 0.0
    %179 = vmatpush1.msra.mxu0 %v58
    %180 = vmatprep.subr.mxu0 0.0
    %181 = vmatpush1.msra.mxu0 %v59
    %182 = vmatprep.subr.mxu0 0.0
    %183 = vmatpush1.msra.mxu0 %v60
    %184 = vmatprep.subr.mxu0 0.0
    %185 = vmatpush1.msra.mxu0 %v61
    %186 = vmatprep.subr.mxu0 0.0
    %187 = vmatpush1.msra.mxu0 %v62
    %188 = vmatprep.subr.mxu0 0.0
    %189 = vmatpush1.msra.mxu0 %v63
    %190 = vmatprep.subr.mxu0 0.0
    %191 = vmatpush1.msra.mxu0 %v64
    %192 = vmatprep.subr.mxu0 0.0
    %193 = vmatpush1.msra.mxu0 %v65
    %194 = vmatprep.subr.mxu0 0.0
    %195 = vmatpush1.msra.mxu0 %v66
    %196 = vmatprep.subr.mxu0 0.0
    %197 = vmatpush1.msra.mxu0 %v67
    %198 = vmatprep.subr.mxu0 0.0
    %199 = vmatpush1.msra.mxu0 %v68
    %200 = vmatprep.subr.mxu0 0.0
    %201 = vmatpush1.msra.mxu0 %v69
    %202 = vmatprep.subr.mxu0 0.0
    %203 = vmatpush1.msra.mxu0 %v70
    %204 = vmatprep.subr.mxu0 0.0
    %205 = vmatpush1.msra.mxu0 %v71
    %206 = vmatprep.subr.mxu0 0.0
    %207 = vmatpush1.msra.mxu0 0.0
    %208 = vmatprep.subr.mxu0 0.0
    %209 = vmatpush1.msra.mxu0 0.0
    %210 = vmatprep.subr.mxu0 0.0
    %211 = vmatpush1.msra.mxu0 0.0
    %212 = vmatprep.subr.mxu0 0.0
    %213 = vmatpush1.msra.mxu0 0.0
    %214 = vmatprep.subr.mxu0 0.0
    %215 = vmatpush1.msra.mxu0 0.0
    %216 = vmatprep.subr.mxu0 0.0
    %217 = vmatpush1.msra.mxu0 0.0
    %218 = vmatprep.subr.mxu0 0.0
    %219 = vmatpush1.msra.mxu0 0.0
    %220 = vmatprep.subr.mxu0 0.0
    %221 = vmatpush1.msra.mxu0 0.0
    %222 = vmatprep.subr.mxu0 0.0
    %223 = vmatpush1.msra.mxu0 0.0
    %224 = vmatprep.subr.mxu0 0.0
    %225 = vmatpush1.msra.mxu0 0.0
    %226 = vmatprep.subr.mxu0 0.0
    %227 = vmatpush1.msra.mxu0 0.0
    %228 = vmatprep.subr.mxu0 0.0
    %229 = vmatpush1.msra.mxu0 0.0
    %230 = vmatprep.subr.mxu0 0.0
    %231 = vmatpush1.msra.mxu0 0.0
    %232 = vmatprep.subr.mxu0 0.0
    %233 = vmatpush1.msra.mxu0 0.0
    %234 = vmatprep.subr.mxu0 0.0
    %235 = vmatpush1.msra.mxu0 0.0
    %236 = vmatprep.subr.mxu0 0.0
    %237 = vmatpush1.msra.mxu0 0.0
    %238 = vmatprep.mubr.f32.mxu0 0.0
    %239 = vmatmul.mubr.f32.gmra.mrb[0].mxu0 %v169
    %v240 = vpop.f32.mrb[0].mxu0
    %v241 = vadd.f32 %v173, %v240
    %v242 = vpop.f32.mrb[0].mxu0
    %243 = vdwg.mxu0
    %v244 = vmax.f32 %v241, 0.0
    %v245 = vlaneseq
    %v246 = vshrl.u32 %v245, 7
    %v247 = vsub.s32 0, %v246
    %v248 = vrot.slane %v90, %v247
    %249 = vmatprep.subr.mxu0 0.0
    %250 = vmatpush1.msra.mxu0 %v72
    %251 = vmatprep.subr.mxu0 0.0
    %252 = vmatpush1.msra.mxu0 %v73
    %253 = vmatprep.subr.mxu0 0.0
    %254 = vmatpush1.msra.mxu0 %v74
    %255 = vmatprep.subr.mxu0 0.0
    %256 = vmatpush1.msra.mxu0 %v75
    %257 = vmatprep.subr.mxu0 0.0
    %258 = vmatpush1.msra.mxu0 %v76
    %259 = vmatprep.subr.mxu0 0.0
    %260 = vmatpush1.msra.mxu0 %v77
    %261 = vmatprep.subr.mxu0 0.0
    %262 = vmatpush1.msra.mxu0 %v78
    %263 = vmatprep.subr.mxu0 0.0
    %264 = vmatpush1.msra.mxu0 %v79
    %265 = vmatprep.subr.mxu0 0.0
    %266 = vmatpush1.msra.mxu0 %v80
    %267 = vmatprep.subr.mxu0 0.0
    %268 = vmatpush1.msra.mxu0 %v81
    %269 = vmatprep.subr.mxu0 0.0
    %270 = vmatpush1.msra.mxu0 %v82
    %271 = vmatprep.subr.mxu0 0.0
    %272 = vmatpush1.msra.mxu0 %v83
    %273 = vmatprep.subr.mxu0 0.0
    %274 = vmatpush1.msra.mxu0 %v84
    %275 = vmatprep.subr.mxu0 0.0
    %276 = vmatpush1.msra.mxu0 %v85
    %277 = vmatprep.subr.mxu0 0.0
    %278 = vmatpush1.msra.mxu0 %v86
    %279 = vmatprep.subr.mxu0 0.0
    %280 = vmatpush1.msra.mxu0 %v87
    %281 = vmatprep.subr.mxu0 0.0
    %282 = vmatpush1.msra.mxu0 0.0
    %283 = vmatprep.subr.mxu0 0.0
    %284 = vmatpush1.msra.mxu0 0.0
    %285 = vmatprep.subr.mxu0 0.0
    %286 = vmatpush1.msra.mxu0 0.0
    %287 = vmatprep.subr.mxu0 0.0
    %288 = vmatpush1.msra.mxu0 0.0
    %289 = vmatprep.subr.mxu0 0.0
    %290 = vmatpush1.msra.mxu0 0.0
    %291 = vmatprep.subr.mxu0 0.0
    %292 = vmatpush1.msra.mxu0 0.0
    %293 = vmatprep.subr.mxu0 0.0
    %294 = vmatpush1.msra.mxu0 0.0
    %295 = vmatprep.subr.mxu0 0.0
    %296 = vmatpush1.msra.mxu0 0.0
    %297 = vmatprep.subr.mxu0 0.0
    %298 = vmatpush1.msra.mxu0 0.0
    %299 = vmatprep.subr.mxu0 0.0
    %300 = vmatpush1.msra.mxu0 0.0
    %301 = vmatprep.subr.mxu0 0.0
    %302 = vmatpush1.msra.mxu0 0.0
    %303 = vmatprep.subr.mxu0 0.0
    %304 = vmatpush1.msra.mxu0 0.0
    %305 = vmatprep.subr.mxu0 0.0
    %306 = vmatpush1.msra.mxu0 0.0
    %307 = vmatprep.subr.mxu0 0.0
    %308 = vmatpush1.msra.mxu0 0.0
    %309 = vmatprep.subr.mxu0 0.0
    %310 = vmatpush1.msra.mxu0 0.0
    %311 = vmatprep.subr.mxu0 0.0
    %312 = vmatpush1.msra.mxu0 0.0
    %313 = vmatprep.mubr.f32.mxu0 0.0
    %314 = vmatmul.mubr.f32.gmra.mrb[0].mxu0 %v244
    %v315 = vpop.f32.mrb[0].mxu0
    %v316 = vadd.f32 %v248, %v315
    %v317 = vpop.f32.mrb[0].mxu0
    %318 = vdwg.mxu0
    %vm319 = vcmask 31744
    %320 = vst.msk [vmem:[%s3] sm:$0xff] %vm319, %v316
    // Predicated region
    $region26: #{tpu_custom_call.1} parent=1 // pred_check
      _
    $region27: #{tpu_custom_call.1} parent=1 // pred_check_branch
      %322 = sbr.rel (0) target = $region29
    $region28: #{tpu_custom_call.1} parent=1 // pred_region
      _
    $region29: #{tpu_custom_call.1} parent=1 // pred_fallthru
      _
    // Predicated region
    $region30: #{tpu_custom_call.1} parent=1 // pred_check
      _
    $region31: #{tpu_custom_call.1} parent=1 // pred_check_branch
      %324 = sbr.rel (0) target = $region33
    $region32: #{tpu_custom_call.1} parent=1 // pred_region
      _
    $region33: #{tpu_custom_call.1} parent=1 // pred_fallthru
      _
    %325 = vsyncpa [#allocation3], 1
    %326 = vsyncpa [#allocation5], 1

</llo_original>
